<compile_context>
chip_gen: v5e
topology: v5e:2x2
jax: 0.10.0
libtpu: 0.0.40
codegen_flags: <defaults>
</compile_context>

<pallas_src>
import jax
import jax.numpy as jnp
from jax import lax
from jax.experimental import pallas as pl
from jax.experimental.pallas import tpu as pltpu


def _round_up(x, m):
    return (x + m - 1) // m * m


def rnn_recurrent_kernel(x_ref, wxh_ref, b_ref, whh_ref, out_ref, h_ref):
    """One grid step = (batch block, time chunk).

    x_ref   : (Tc, B_blk, I_pad)  mxu dtype  raw input chunk, time-major
    wxh_ref : (I_pad, H_pad)      mxu dtype  Wxh^T, resident across the grid
    b_ref   : (1, H_pad)          f32        bias
    whh_ref : (H_pad, H_pad)      mxu dtype  Whh^T, resident across the grid
    out_ref : (Tc, B_blk, H_pad)  out dtype  time-major output chunk
    h_ref   : (B_blk, H_pad)      f32        hidden-state carry across chunks
    """
    # Re-zero the carry at the start of each batch block's sweep over time chunks
    # (chunk axis is grid axis 1).
    @pl.when(pl.program_id(1) == 0)
    def _init():
        h_ref[...] = jnp.zeros_like(h_ref)

    tc, bblk, _ = x_ref.shape
    hpad = out_ref.shape[-1]

    # Hoist the bias broadcast out of the loop (JAX does not CSE broadcast_in_dim).
    bias = jnp.broadcast_to(b_ref[...], (bblk, hpad))

    def step(t, h):
        # Time-parallel projection for step t: no serial dependency on h, so within the
        # unrolled window it overlaps with the recurrent matmul chain.
        proj = jnp.dot(x_ref[t], wxh_ref[...], preferred_element_type=jnp.float32)
        rec = jnp.dot(h.astype(whh_ref.dtype), whh_ref[...],
                      preferred_element_type=jnp.float32)
        h = jnp.maximum(proj + rec + bias, 0.0)
        out_ref[t] = h.astype(out_ref.dtype)     # dense (B_blk, H_pad) slab store
        return h

    h_ref[...] = lax.fori_loop(0, tc, step, h_ref[...],
                               unroll=max(1, min(tc, 8)))


def rnn_forward(x, w_xh, w_hh, b_h, *, mxu_dtype=jnp.bfloat16):
    """x: (B, T, I); w_xh: (H, I); w_hh: (H, H); b_h: (H,) -> (B, T, H)."""
    B, T, I = x.shape
    H = w_xh.shape[0]
    out_dtype = x.dtype
    w_itemsize = jnp.dtype(mxu_dtype).itemsize
    out_itemsize = jnp.dtype(out_dtype).itemsize

    # ---- Lane/sublane alignment (last two block dims are (B_blk, *_pad)).
    b_mult = 8 * max(1, 4 // w_itemsize)          # 8 for f32 operands, 16 for bf16
    H_pad = _round_up(H, 128)
    I_pad = _round_up(I, 128)

    # ---- Batch-parallel grid axis (feeds the 2nd TensorCore on v7x) when B allows.
    if B >= 2 * b_mult:
        nb = 2
        B_blk = _round_up(_round_up(B, 2) // 2, b_mult)
    else:
        nb = 1
        B_blk = _round_up(B, b_mult)
    B_pad = nb * B_blk

    # ---- VMEM-budget-driven time-chunk size.
    try:
        vmem_cap = int(pltpu.get_tpu_info().vmem_capacity_bytes)
    except Exception:
        vmem_cap = 64 * 1024 * 1024               # v7x per-core VMEM (most conservative)
    resident_bytes = (2 * I_pad * H_pad * w_itemsize      # Wxh^T (double-buffered)
                      + 2 * H_pad * H_pad * w_itemsize    # Whh^T (double-buffered)
                      + 2 * H_pad * 4                     # bias
                      + B_blk * H_pad * 4)                # hidden carry scratch
    per_step_bytes = B_blk * (2 * I_pad * w_itemsize      # x chunk (double-buffered)
                              + 2 * H_pad * out_itemsize)  # out chunk (double-buffered)
    slab_budget = max(per_step_bytes, int(0.55 * vmem_cap) - resident_bytes)
    Tc = int(max(1, min(T, 256, slab_budget // per_step_bytes)))
    num_chunks = pl.cdiv(T, Tc)
    T_pad = num_chunks * Tc

    # ---- Time-major, zero-padded operands.  Zero padding is exact: padded H lanes get
    # zero bias / zero weight columns, padded batch rows and trailing padded timesteps
    # never feed real outputs (do NOT add any additive term over H_pad beyond b_ref!).
    x_tm = jnp.pad(jnp.transpose(x, (1, 0, 2)),
                   ((0, T_pad - T), (0, B_pad - B), (0, I_pad - I))).astype(mxu_dtype)
    wxh_t = jnp.pad(jnp.transpose(w_xh, (1, 0)),
                    ((0, I_pad - I), (0, H_pad - H))).astype(mxu_dtype)
    whh_t = jnp.pad(jnp.transpose(w_hh, (1, 0)),
                    ((0, H_pad - H), (0, H_pad - H))).astype(mxu_dtype)
    b2d = jnp.pad(b_h.astype(jnp.float32), (0, H_pad - H)).reshape(1, H_pad)

    vmem_needed = resident_bytes + Tc * per_step_bytes
    vmem_limit = int(min(max(vmem_needed * 5 // 4 + (2 << 20), 32 << 20),
                         int(0.9 * vmem_cap)))

    cost = pl.CostEstimate(
        flops=2 * B_pad * T_pad * H_pad * (H_pad + I_pad) + 3 * B_pad * T_pad * H_pad,
        transcendentals=0,
        bytes_accessed=(x_tm.size * w_itemsize + wxh_t.size * w_itemsize
                        + whh_t.size * w_itemsize + b2d.size * 4
                        + T_pad * B_pad * H_pad * out_itemsize),
    )

    out_tm = pl.pallas_call(
        rnn_recurrent_kernel,
        out_shape=jax.ShapeDtypeStruct((T_pad, B_pad, H_pad), out_dtype),
        grid_spec=pltpu.PrefetchScalarGridSpec(
            num_scalar_prefetch=0,
            grid=(nb, num_chunks),
            in_specs=[
                pl.BlockSpec((Tc, B_blk, I_pad), lambda b, c: (c, b, 0)),  # x chunk
                pl.BlockSpec((I_pad, H_pad), lambda b, c: (0, 0)),         # Wxh^T resident
                pl.BlockSpec((1, H_pad), lambda b, c: (0, 0)),             # bias resident
                pl.BlockSpec((H_pad, H_pad), lambda b, c: (0, 0)),         # Whh^T resident
            ],
            out_specs=pl.BlockSpec((Tc, B_blk, H_pad), lambda b, c: (c, b, 0)),
            scratch_shapes=[pltpu.VMEM((B_blk, H_pad), jnp.float32)],      # hidden carry
        ),
        compiler_params=pltpu.CompilerParams(
            dimension_semantics=("parallel", "arbitrary"),   # batch || , time chunks serial
            vmem_limit_bytes=vmem_limit,
        ),
        cost_estimate=cost,
    )(x_tm, wxh_t, b2d, whh_t)

    return jnp.transpose(out_tm[:T, :B, :H], (1, 0, 2))


def rnn_reference(x, w_xh, w_hh, b_h, *, mxu_dtype=jnp.float32):
    """Pure-JAX reference matching the PyTorch module (with matching operand dtype)."""
    B, T, I = x.shape
    H = w_xh.shape[0]
    wxh_t = jnp.transpose(w_xh, (1, 0)).astype(mxu_dtype)
    whh_t = jnp.transpose(w_hh, (1, 0)).astype(mxu_dtype)
    h = jnp.zeros((B, H), jnp.float32)
    outs = []
    for t in range(T):
        x_t = x[:, t, :].astype(mxu_dtype)
        pre = (jnp.dot(x_t, wxh_t, preferred_element_type=jnp.float32)
               + jnp.dot(h.astype(mxu_dtype), whh_t, preferred_element_type=jnp.float32)
               + b_h.astype(jnp.float32))
        h = jnp.maximum(pre, 0.0)
        outs.append(h)
    return jnp.stack(outs, axis=1).astype(x.dtype)


if __name__ == "__main__":
    B, T, I, H = 2, 8, 16, 32

    key = jax.random.PRNGKey(0)
    kx, kwxh, kwhh, kb = jax.random.split(key, 4)

    x = jax.random.normal(kx, (B, T, I), dtype=jnp.float32)
    w_xh = jax.random.uniform(kwxh, (H, I), minval=-0.25, maxval=0.25, dtype=jnp.float32)
    w_hh = jax.random.uniform(kwhh, (H, H), minval=-0.18, maxval=0.18, dtype=jnp.float32)
    b_h = 0.01 * jax.random.normal(kb, (H,), dtype=jnp.float32)

    rnn = jax.jit(rnn_forward, static_argnames=("mxu_dtype",))

    # f32 operand path: must match the PyTorch-equivalent f32 reference tightly.
    out_f32 = jax.block_until_ready(rnn(x, w_xh, w_hh, b_h, mxu_dtype=jnp.float32))
    ref_f32 = rnn_reference(x, w_xh, w_hh, b_h, mxu_dtype=jnp.float32)
    assert out_f32.shape == (B, T, H)
    assert jnp.allclose(out_f32, ref_f32, atol=1e-4, rtol=1e-4), "f32 mismatch vs reference"

    # Default fast path: bf16 MXU operands with f32 accumulation / f32 hidden carry.
    out_bf = jax.block_until_ready(rnn(x, w_xh, w_hh, b_h))
    ref_bf = rnn_reference(x, w_xh, w_hh, b_h, mxu_dtype=jnp.bfloat16)
    assert out_bf.shape == (B, T, H)
    assert jnp.allclose(out_bf, ref_bf, atol=1e-2, rtol=1e-2), "bf16 mismatch vs reference"

    print("KERNEL_OK")
</pallas_src>

<mosaic_0001>
module attributes {stable_mosaic.version = 11 : i64} {
  func.func @rnn_recurrent_kernel(%arg0: i32, %arg1: i32, %arg2: memref<8x8x128xf32, #tpu.memory_space<vmem>>, %arg3: memref<128x128xf32, #tpu.memory_space<vmem>>, %arg4: memref<1x128xf32, #tpu.memory_space<vmem>>, %arg5: memref<128x128xf32, #tpu.memory_space<vmem>>, %arg6: memref<8x8x128xf32, #tpu.memory_space<vmem>>, %arg7: memref<8x128xf32, #tpu.memory_space<vmem>>) attributes {dimension_semantics = [#tpu.dimension_semantics<parallel>, #tpu.dimension_semantics<arbitrary>], iteration_bounds = array<i64: 1, 1>, scalar_prefetch = 0 : i64, scratch_operands = 1 : i64, tpu.core_type = #tpu.core_type<tc>, window_params = [{transform_indices = @transform_0, window_bounds = array<i64: 8, 8, 128>}, {pipeline_mode = #tpu.pipeline_mode<synchronous>, transform_indices = @transform_1, window_bounds = array<i64: 128, 128>}, {pipeline_mode = #tpu.pipeline_mode<synchronous>, transform_indices = @transform_2, window_bounds = array<i64: 1, 128>}, {pipeline_mode = #tpu.pipeline_mode<synchronous>, transform_indices = @transform_3, window_bounds = array<i64: 128, 128>}, {transform_indices = @transform_4, window_bounds = array<i64: 8, 8, 128>}]} {
    %c0_i32 = arith.constant 0 : i32
    %0 = arith.cmpi eq, %arg1, %c0_i32 : i32
    %1 = arith.extui %0 : i1 to i32
    %c0_i32_0 = arith.constant 0 : i32
    %2 = arith.cmpi ne, %1, %c0_i32_0 : i32
    scf.if %2 {
      %cst_94 = arith.constant 0.000000e+00 : f32
      %128 = vector.broadcast %cst_94 : f32 to vector<8x128xf32>
      %c0_95 = arith.constant 0 : index
      %c0_96 = arith.constant 0 : index
      %129 = vector.load %arg7[%c0_95, %c0_96] : memref<8x128xf32, #tpu.memory_space<vmem>>, vector<8x128xf32>
      tpu.vector_store %arg7[%c0_95, %c0_96], %128 {strides = array<i32>} : memref<8x128xf32, #tpu.memory_space<vmem>>, vector<8x128xf32>,
    } else {
    }
    %c0 = arith.constant 0 : index
    %c0_1 = arith.constant 0 : index
    %3 = vector.load %arg4[%c0, %c0_1] : memref<1x128xf32, #tpu.memory_space<vmem>>, vector<1x128xf32>
    %4 = vector.shape_cast %3 : vector<1x128xf32> to vector<1x128xf32>
    %5 = vector.broadcast %4 : vector<1x128xf32> to vector<8x128xf32>
    %c0_2 = arith.constant 0 : index
    %c0_3 = arith.constant 0 : index
    %6 = vector.load %arg7[%c0_2, %c0_3] : memref<8x128xf32, #tpu.memory_space<vmem>>, vector<8x128xf32>
    %c0_i32_4 = arith.constant 0 : i32
    %7 = arith.index_cast %c0_i32_4 : i32 to index
    %c0_5 = arith.constant 0 : index
    %c0_6 = arith.constant 0 : index
    %8 = vector.load %arg2[%7, %c0_5, %c0_6] : memref<8x8x128xf32, #tpu.memory_space<vmem>>, vector<1x8x128xf32>
    %9 = vector.shape_cast %8 : vector<1x8x128xf32> to vector<8x128xf32>
    %c0_7 = arith.constant 0 : index
    %c0_8 = arith.constant 0 : index
    %10 = vector.load %arg3[%c0_7, %c0_8] : memref<128x128xf32, #tpu.memory_space<vmem>>, vector<128x128xf32>
    %cst = arith.constant dense<0.000000e+00> : vector<8x128xf32>
    %11 = tpu.matmul %9, %10, %cst {dimension_numbers = #tpu.dot_dimension_numbers<[1], [0], [0], [1], [0, 0, 1, 1], [], []>} : vector<8x128xf32>, vector<128x128xf32>, vector<8x128xf32> -> vector<8x128xf32>
    %c0_9 = arith.constant 0 : index
    %c0_10 = arith.constant 0 : index
    %12 = vector.load %arg5[%c0_9, %c0_10] : memref<128x128xf32, #tpu.memory_space<vmem>>, vector<128x128xf32>
    %cst_11 = arith.constant dense<0.000000e+00> : vector<8x128xf32>
    %13 = tpu.matmul %6, %12, %cst_11 {dimension_numbers = #tpu.dot_dimension_numbers<[1], [0], [0], [1], [0, 0, 1, 1], [], []>} : vector<8x128xf32>, vector<128x128xf32>, vector<8x128xf32> -> vector<8x128xf32>
    %14 = arith.addf %11, %13 : vector<8x128xf32>
    %15 = arith.addf %14, %5 : vector<8x128xf32>
    %cst_12 = arith.constant 0.000000e+00 : f32
    %16 = vector.broadcast %cst_12 : f32 to vector<8x128xf32>
    %17 = arith.maximumf %15, %16 : vector<8x128xf32>
    %18 = arith.index_cast %c0_i32_4 : i32 to index
    %c0_13 = arith.constant 0 : index
    %c0_14 = arith.constant 0 : index
    %19 = vector.load %arg6[%18, %c0_13, %c0_14] : memref<8x8x128xf32, #tpu.memory_space<vmem>>, vector<1x8x128xf32>
    %20 = vector.shape_cast %19 : vector<1x8x128xf32> to vector<8x128xf32>
    %21 = vector.shape_cast %17 : vector<8x128xf32> to vector<1x8x128xf32>
    tpu.vector_store %arg6[%18, %c0_13, %c0_14], %21 {strides = array<i32>} : memref<8x8x128xf32, #tpu.memory_space<vmem>>, vector<1x8x128xf32>,
    %c1_i32 = arith.constant 1 : i32
    %22 = arith.index_cast %c1_i32 : i32 to index
    %c0_15 = arith.constant 0 : index
    %c0_16 = arith.constant 0 : index
    %23 = vector.load %arg2[%22, %c0_15, %c0_16] : memref<8x8x128xf32, #tpu.memory_space<vmem>>, vector<1x8x128xf32>
    %24 = vector.shape_cast %23 : vector<1x8x128xf32> to vector<8x128xf32>
    %c0_17 = arith.constant 0 : index
    %c0_18 = arith.constant 0 : index
    %25 = vector.load %arg3[%c0_17, %c0_18] : memref<128x128xf32, #tpu.memory_space<vmem>>, vector<128x128xf32>
    %cst_19 = arith.constant dense<0.000000e+00> : vector<8x128xf32>
    %26 = tpu.matmul %24, %25, %cst_19 {dimension_numbers = #tpu.dot_dimension_numbers<[1], [0], [0], [1], [0, 0, 1, 1], [], []>} : vector<8x128xf32>, vector<128x128xf32>, vector<8x128xf32> -> vector<8x128xf32>
    %c0_20 = arith.constant 0 : index
    %c0_21 = arith.constant 0 : index
    %27 = vector.load %arg5[%c0_20, %c0_21] : memref<128x128xf32, #tpu.memory_space<vmem>>, vector<128x128xf32>
    %cst_22 = arith.constant dense<0.000000e+00> : vector<8x128xf32>
    %28 = tpu.matmul %17, %27, %cst_22 {dimension_numbers = #tpu.dot_dimension_numbers<[1], [0], [0], [1], [0, 0, 1, 1], [], []>} : vector<8x128xf32>, vector<128x128xf32>, vector<8x128xf32> -> vector<8x128xf32>
    %29 = arith.addf %26, %28 : vector<8x128xf32>
    %30 = arith.addf %29, %5 : vector<8x128xf32>
    %cst_23 = arith.constant 0.000000e+00 : f32
    %31 = vector.broadcast %cst_23 : f32 to vector<8x128xf32>
    %32 = arith.maximumf %30, %31 : vector<8x128xf32>
    %33 = arith.index_cast %c1_i32 : i32 to index
    %c0_24 = arith.constant 0 : index
    %c0_25 = arith.constant 0 : index
    %34 = vector.load %arg6[%33, %c0_24, %c0_25] : memref<8x8x128xf32, #tpu.memory_space<vmem>>, vector<1x8x128xf32>
    %35 = vector.shape_cast %34 : vector<1x8x128xf32> to vector<8x128xf32>
    %36 = vector.shape_cast %32 : vector<8x128xf32> to vector<1x8x128xf32>
    tpu.vector_store %arg6[%33, %c0_24, %c0_25], %36 {strides = array<i32>} : memref<8x8x128xf32, #tpu.memory_space<vmem>>, vector<1x8x128xf32>,
    %c2_i32 = arith.constant 2 : i32
    %37 = arith.index_cast %c2_i32 : i32 to index
    %c0_26 = arith.constant 0 : index
    %c0_27 = arith.constant 0 : index
    %38 = vector.load %arg2[%37, %c0_26, %c0_27] : memref<8x8x128xf32, #tpu.memory_space<vmem>>, vector<1x8x128xf32>
    %39 = vector.shape_cast %38 : vector<1x8x128xf32> to vector<8x128xf32>
    %c0_28 = arith.constant 0 : index
    %c0_29 = arith.constant 0 : index
    %40 = vector.load %arg3[%c0_28, %c0_29] : memref<128x128xf32, #tpu.memory_space<vmem>>, vector<128x128xf32>
    %cst_30 = arith.constant dense<0.000000e+00> : vector<8x128xf32>
    %41 = tpu.matmul %39, %40, %cst_30 {dimension_numbers = #tpu.dot_dimension_numbers<[1], [0], [0], [1], [0, 0, 1, 1], [], []>} : vector<8x128xf32>, vector<128x128xf32>, vector<8x128xf32> -> vector<8x128xf32>
    %c0_31 = arith.constant 0 : index
    %c0_32 = arith.constant 0 : index
    %42 = vector.load %arg5[%c0_31, %c0_32] : memref<128x128xf32, #tpu.memory_space<vmem>>, vector<128x128xf32>
    %cst_33 = arith.constant dense<0.000000e+00> : vector<8x128xf32>
    %43 = tpu.matmul %32, %42, %cst_33 {dimension_numbers = #tpu.dot_dimension_numbers<[1], [0], [0], [1], [0, 0, 1, 1], [], []>} : vector<8x128xf32>, vector<128x128xf32>, vector<8x128xf32> -> vector<8x128xf32>
    %44 = arith.addf %41, %43 : vector<8x128xf32>
    %45 = arith.addf %44, %5 : vector<8x128xf32>
    %cst_34 = arith.constant 0.000000e+00 : f32
    %46 = vector.broadcast %cst_34 : f32 to vector<8x128xf32>
    %47 = arith.maximumf %45, %46 : vector<8x128xf32>
    %48 = arith.index_cast %c2_i32 : i32 to index
    %c0_35 = arith.constant 0 : index
    %c0_36 = arith.constant 0 : index
    %49 = vector.load %arg6[%48, %c0_35, %c0_36] : memref<8x8x128xf32, #tpu.memory_space<vmem>>, vector<1x8x128xf32>
    %50 = vector.shape_cast %49 : vector<1x8x128xf32> to vector<8x128xf32>
    %51 = vector.shape_cast %47 : vector<8x128xf32> to vector<1x8x128xf32>
    tpu.vector_store %arg6[%48, %c0_35, %c0_36], %51 {strides = array<i32>} : memref<8x8x128xf32, #tpu.memory_space<vmem>>, vector<1x8x128xf32>,
    %c3_i32 = arith.constant 3 : i32
    %52 = arith.index_cast %c3_i32 : i32 to index
    %c0_37 = arith.constant 0 : index
    %c0_38 = arith.constant 0 : index
    %53 = vector.load %arg2[%52, %c0_37, %c0_38] : memref<8x8x128xf32, #tpu.memory_space<vmem>>, vector<1x8x128xf32>
    %54 = vector.shape_cast %53 : vector<1x8x128xf32> to vector<8x128xf32>
    %c0_39 = arith.constant 0 : index
    %c0_40 = arith.constant 0 : index
    %55 = vector.load %arg3[%c0_39, %c0_40] : memref<128x128xf32, #tpu.memory_space<vmem>>, vector<128x128xf32>
    %cst_41 = arith.constant dense<0.000000e+00> : vector<8x128xf32>
    %56 = tpu.matmul %54, %55, %cst_41 {dimension_numbers = #tpu.dot_dimension_numbers<[1], [0], [0], [1], [0, 0, 1, 1], [], []>} : vector<8x128xf32>, vector<128x128xf32>, vector<8x128xf32> -> vector<8x128xf32>
    %c0_42 = arith.constant 0 : index
    %c0_43 = arith.constant 0 : index
    %57 = vector.load %arg5[%c0_42, %c0_43] : memref<128x128xf32, #tpu.memory_space<vmem>>, vector<128x128xf32>
    %cst_44 = arith.constant dense<0.000000e+00> : vector<8x128xf32>
    %58 = tpu.matmul %47, %57, %cst_44 {dimension_numbers = #tpu.dot_dimension_numbers<[1], [0], [0], [1], [0, 0, 1, 1], [], []>} : vector<8x128xf32>, vector<128x128xf32>, vector<8x128xf32> -> vector<8x128xf32>
    %59 = arith.addf %56, %58 : vector<8x128xf32>
    %60 = arith.addf %59, %5 : vector<8x128xf32>
    %cst_45 = arith.constant 0.000000e+00 : f32
    %61 = vector.broadcast %cst_45 : f32 to vector<8x128xf32>
    %62 = arith.maximumf %60, %61 : vector<8x128xf32>
    %63 = arith.index_cast %c3_i32 : i32 to index
    %c0_46 = arith.constant 0 : index
    %c0_47 = arith.constant 0 : index
    %64 = vector.load %arg6[%63, %c0_46, %c0_47] : memref<8x8x128xf32, #tpu.memory_space<vmem>>, vector<1x8x128xf32>
    %65 = vector.shape_cast %64 : vector<1x8x128xf32> to vector<8x128xf32>
    %66 = vector.shape_cast %62 : vector<8x128xf32> to vector<1x8x128xf32>
    tpu.vector_store %arg6[%63, %c0_46, %c0_47], %66 {strides = array<i32>} : memref<8x8x128xf32, #tpu.memory_space<vmem>>, vector<1x8x128xf32>,
    %c4_i32 = arith.constant 4 : i32
    %67 = arith.index_cast %c4_i32 : i32 to index
    %c0_48 = arith.constant 0 : index
    %c0_49 = arith.constant 0 : index
    %68 = vector.load %arg2[%67, %c0_48, %c0_49] : memref<8x8x128xf32, #tpu.memory_space<vmem>>, vector<1x8x128xf32>
    %69 = vector.shape_cast %68 : vector<1x8x128xf32> to vector<8x128xf32>
    %c0_50 = arith.constant 0 : index
    %c0_51 = arith.constant 0 : index
    %70 = vector.load %arg3[%c0_50, %c0_51] : memref<128x128xf32, #tpu.memory_space<vmem>>, vector<128x128xf32>
    %cst_52 = arith.constant dense<0.000000e+00> : vector<8x128xf32>
    %71 = tpu.matmul %69, %70, %cst_52 {dimension_numbers = #tpu.dot_dimension_numbers<[1], [0], [0], [1], [0, 0, 1, 1], [], []>} : vector<8x128xf32>, vector<128x128xf32>, vector<8x128xf32> -> vector<8x128xf32>
    %c0_53 = arith.constant 0 : index
    %c0_54 = arith.constant 0 : index
    %72 = vector.load %arg5[%c0_53, %c0_54] : memref<128x128xf32, #tpu.memory_space<vmem>>, vector<128x128xf32>
    %cst_55 = arith.constant dense<0.000000e+00> : vector<8x128xf32>
    %73 = tpu.matmul %62, %72, %cst_55 {dimension_numbers = #tpu.dot_dimension_numbers<[1], [0], [0], [1], [0, 0, 1, 1], [], []>} : vector<8x128xf32>, vector<128x128xf32>, vector<8x128xf32> -> vector<8x128xf32>
    %74 = arith.addf %71, %73 : vector<8x128xf32>
    %75 = arith.addf %74, %5 : vector<8x128xf32>
    %cst_56 = arith.constant 0.000000e+00 : f32
    %76 = vector.broadcast %cst_56 : f32 to vector<8x128xf32>
    %77 = arith.maximumf %75, %76 : vector<8x128xf32>
    %78 = arith.index_cast %c4_i32 : i32 to index
    %c0_57 = arith.constant 0 : index
    %c0_58 = arith.constant 0 : index
    %79 = vector.load %arg6[%78, %c0_57, %c0_58] : memref<8x8x128xf32, #tpu.memory_space<vmem>>, vector<1x8x128xf32>
    %80 = vector.shape_cast %79 : vector<1x8x128xf32> to vector<8x128xf32>
    %81 = vector.shape_cast %77 : vector<8x128xf32> to vector<1x8x128xf32>
    tpu.vector_store %arg6[%78, %c0_57, %c0_58], %81 {strides = array<i32>} : memref<8x8x128xf32, #tpu.memory_space<vmem>>, vector<1x8x128xf32>,
    %c5_i32 = arith.constant 5 : i32
    %82 = arith.index_cast %c5_i32 : i32 to index
    %c0_59 = arith.constant 0 : index
    %c0_60 = arith.constant 0 : index
    %83 = vector.load %arg2[%82, %c0_59, %c0_60] : memref<8x8x128xf32, #tpu.memory_space<vmem>>, vector<1x8x128xf32>
    %84 = vector.shape_cast %83 : vector<1x8x128xf32> to vector<8x128xf32>
    %c0_61 = arith.constant 0 : index
    %c0_62 = arith.constant 0 : index
    %85 = vector.load %arg3[%c0_61, %c0_62] : memref<128x128xf32, #tpu.memory_space<vmem>>, vector<128x128xf32>
    %cst_63 = arith.constant dense<0.000000e+00> : vector<8x128xf32>
    %86 = tpu.matmul %84, %85, %cst_63 {dimension_numbers = #tpu.dot_dimension_numbers<[1], [0], [0], [1], [0, 0, 1, 1], [], []>} : vector<8x128xf32>, vector<128x128xf32>, vector<8x128xf32> -> vector<8x128xf32>
    %c0_64 = arith.constant 0 : index
    %c0_65 = arith.constant 0 : index
    %87 = vector.load %arg5[%c0_64, %c0_65] : memref<128x128xf32, #tpu.memory_space<vmem>>, vector<128x128xf32>
    %cst_66 = arith.constant dense<0.000000e+00> : vector<8x128xf32>
    %88 = tpu.matmul %77, %87, %cst_66 {dimension_numbers = #tpu.dot_dimension_numbers<[1], [0], [0], [1], [0, 0, 1, 1], [], []>} : vector<8x128xf32>, vector<128x128xf32>, vector<8x128xf32> -> vector<8x128xf32>
    %89 = arith.addf %86, %88 : vector<8x128xf32>
    %90 = arith.addf %89, %5 : vector<8x128xf32>
    %cst_67 = arith.constant 0.000000e+00 : f32
    %91 = vector.broadcast %cst_67 : f32 to vector<8x128xf32>
    %92 = arith.maximumf %90, %91 : vector<8x128xf32>
    %93 = arith.index_cast %c5_i32 : i32 to index
    %c0_68 = arith.constant 0 : index
    %c0_69 = arith.constant 0 : index
    %94 = vector.load %arg6[%93, %c0_68, %c0_69] : memref<8x8x128xf32, #tpu.memory_space<vmem>>, vector<1x8x128xf32>
    %95 = vector.shape_cast %94 : vector<1x8x128xf32> to vector<8x128xf32>
    %96 = vector.shape_cast %92 : vector<8x128xf32> to vector<1x8x128xf32>
    tpu.vector_store %arg6[%93, %c0_68, %c0_69], %96 {strides = array<i32>} : memref<8x8x128xf32, #tpu.memory_space<vmem>>, vector<1x8x128xf32>,
    %c6_i32 = arith.constant 6 : i32
    %97 = arith.index_cast %c6_i32 : i32 to index
    %c0_70 = arith.constant 0 : index
    %c0_71 = arith.constant 0 : index
    %98 = vector.load %arg2[%97, %c0_70, %c0_71] : memref<8x8x128xf32, #tpu.memory_space<vmem>>, vector<1x8x128xf32>
    %99 = vector.shape_cast %98 : vector<1x8x128xf32> to vector<8x128xf32>
    %c0_72 = arith.constant 0 : index
    %c0_73 = arith.constant 0 : index
    %100 = vector.load %arg3[%c0_72, %c0_73] : memref<128x128xf32, #tpu.memory_space<vmem>>, vector<128x128xf32>
    %cst_74 = arith.constant dense<0.000000e+00> : vector<8x128xf32>
    %101 = tpu.matmul %99, %100, %cst_74 {dimension_numbers = #tpu.dot_dimension_numbers<[1], [0], [0], [1], [0, 0, 1, 1], [], []>} : vector<8x128xf32>, vector<128x128xf32>, vector<8x128xf32> -> vector<8x128xf32>
    %c0_75 = arith.constant 0 : index
    %c0_76 = arith.constant 0 : index
    %102 = vector.load %arg5[%c0_75, %c0_76] : memref<128x128xf32, #tpu.memory_space<vmem>>, vector<128x128xf32>
    %cst_77 = arith.constant dense<0.000000e+00> : vector<8x128xf32>
    %103 = tpu.matmul %92, %102, %cst_77 {dimension_numbers = #tpu.dot_dimension_numbers<[1], [0], [0], [1], [0, 0, 1, 1], [], []>} : vector<8x128xf32>, vector<128x128xf32>, vector<8x128xf32> -> vector<8x128xf32>
    %104 = arith.addf %101, %103 : vector<8x128xf32>
    %105 = arith.addf %104, %5 : vector<8x128xf32>
    %cst_78 = arith.constant 0.000000e+00 : f32
    %106 = vector.broadcast %cst_78 : f32 to vector<8x128xf32>
    %107 = arith.maximumf %105, %106 : vector<8x128xf32>
    %108 = arith.index_cast %c6_i32 : i32 to index
    %c0_79 = arith.constant 0 : index
    %c0_80 = arith.constant 0 : index
    %109 = vector.load %arg6[%108, %c0_79, %c0_80] : memref<8x8x128xf32, #tpu.memory_space<vmem>>, vector<1x8x128xf32>
    %110 = vector.shape_cast %109 : vector<1x8x128xf32> to vector<8x128xf32>
    %111 = vector.shape_cast %107 : vector<8x128xf32> to vector<1x8x128xf32>
    tpu.vector_store %arg6[%108, %c0_79, %c0_80], %111 {strides = array<i32>} : memref<8x8x128xf32, #tpu.memory_space<vmem>>, vector<1x8x128xf32>,
    %c7_i32 = arith.constant 7 : i32
    %112 = arith.index_cast %c7_i32 : i32 to index
    %c0_81 = arith.constant 0 : index
    %c0_82 = arith.constant 0 : index
    %113 = vector.load %arg2[%112, %c0_81, %c0_82] : memref<8x8x128xf32, #tpu.memory_space<vmem>>, vector<1x8x128xf32>
    %114 = vector.shape_cast %113 : vector<1x8x128xf32> to vector<8x128xf32>
    %c0_83 = arith.constant 0 : index
    %c0_84 = arith.constant 0 : index
    %115 = vector.load %arg3[%c0_83, %c0_84] : memref<128x128xf32, #tpu.memory_space<vmem>>, vector<128x128xf32>
    %cst_85 = arith.constant dense<0.000000e+00> : vector<8x128xf32>
    %116 = tpu.matmul %114, %115, %cst_85 {dimension_numbers = #tpu.dot_dimension_numbers<[1], [0], [0], [1], [0, 0, 1, 1], [], []>} : vector<8x128xf32>, vector<128x128xf32>, vector<8x128xf32> -> vector<8x128xf32>
    %c0_86 = arith.constant 0 : index
    %c0_87 = arith.constant 0 : index
    %117 = vector.load %arg5[%c0_86, %c0_87] : memref<128x128xf32, #tpu.memory_space<vmem>>, vector<128x128xf32>
    %cst_88 = arith.constant dense<0.000000e+00> : vector<8x128xf32>
    %118 = tpu.matmul %107, %117, %cst_88 {dimension_numbers = #tpu.dot_dimension_numbers<[1], [0], [0], [1], [0, 0, 1, 1], [], []>} : vector<8x128xf32>, vector<128x128xf32>, vector<8x128xf32> -> vector<8x128xf32>
    %119 = arith.addf %116, %118 : vector<8x128xf32>
    %120 = arith.addf %119, %5 : vector<8x128xf32>
    %cst_89 = arith.constant 0.000000e+00 : f32
    %121 = vector.broadcast %cst_89 : f32 to vector<8x128xf32>
    %122 = arith.maximumf %120, %121 : vector<8x128xf32>
    %123 = arith.index_cast %c7_i32 : i32 to index
    %c0_90 = arith.constant 0 : index
    %c0_91 = arith.constant 0 : index
    %124 = vector.load %arg6[%123, %c0_90, %c0_91] : memref<8x8x128xf32, #tpu.memory_space<vmem>>, vector<1x8x128xf32>
    %125 = vector.shape_cast %124 : vector<1x8x128xf32> to vector<8x128xf32>
    %126 = vector.shape_cast %122 : vector<8x128xf32> to vector<1x8x128xf32>
    tpu.vector_store %arg6[%123, %c0_90, %c0_91], %126 {strides = array<i32>} : memref<8x8x128xf32, #tpu.memory_space<vmem>>, vector<1x8x128xf32>,
    %c8_i32 = arith.constant 8 : i32
    %c0_92 = arith.constant 0 : index
    %c0_93 = arith.constant 0 : index
    %127 = vector.load %arg7[%c0_92, %c0_93] : memref<8x128xf32, #tpu.memory_space<vmem>>, vector<8x128xf32>
    tpu.vector_store %arg7[%c0_92, %c0_93], %122 {strides = array<i32>} : memref<8x128xf32, #tpu.memory_space<vmem>>, vector<8x128xf32>,
    return
  }
  func.func @transform_0(%arg0: i32, %arg1: i32) -> (i32, i32, i32) {
    %c0_i32 = arith.constant 0 : i32
    %c0_i32_0 = arith.constant 0 : i32
    return %arg1, %arg0, %c0_i32 : i32, i32, i32
  }
  func.func @transform_1(%arg0: i32, %arg1: i32) -> (i32, i32) {
    %c0_i32 = arith.constant 0 : i32
    %c0_i32_0 = arith.constant 0 : i32
    %c0_i32_1 = arith.constant 0 : i32
    return %c0_i32, %c0_i32_0 : i32, i32
  }
  func.func @transform_2(%arg0: i32, %arg1: i32) -> (i32, i32) {
    %c0_i32 = arith.constant 0 : i32
    %c0_i32_0 = arith.constant 0 : i32
    %c0_i32_1 = arith.constant 0 : i32
    return %c0_i32, %c0_i32_0 : i32, i32
  }
  func.func @transform_3(%arg0: i32, %arg1: i32) -> (i32, i32) {
    %c0_i32 = arith.constant 0 : i32
    %c0_i32_0 = arith.constant 0 : i32
    %c0_i32_1 = arith.constant 0 : i32
    return %c0_i32, %c0_i32_0 : i32, i32
  }
  func.func @transform_4(%arg0: i32, %arg1: i32) -> (i32, i32, i32) {
    %c0_i32 = arith.constant 0 : i32
    %c0_i32_0 = arith.constant 0 : i32
    return %arg1, %arg0, %c0_i32 : i32, i32, i32
  }
}

</mosaic_0001>

<llo_original>
// kernel: rnn_forward.1
$region0: #{rnn_forward.1}
  #allocation0 [shape = 'u32[]', space=smem, size = 0x4, offset = 0x4, fixed_abs, tag = 'smem constant byte address 0x4 - core index']
  #allocation1 [shape = 'u32[72,128]{1,0:T(1,128)}', space=vmem, size = 0x9000, scoped, tag = 'internal scratch']
  #allocation2 [shape = 'f32[8,128]{1,0:T(8,128)}', space=vmem, size = 0x1000, scoped, tag = 'scratch operand']
  %s0 = inlined_call_operand.vmem [shape: f32[8,8,128], index: 0, kind: input, shape index: {}]
  %s1 = inlined_call_operand.vmem [shape: f32[128,128], index: 1, kind: input, shape index: {}]
  %s2 = inlined_call_operand.vmem [shape: f32[1,128], index: 2, kind: input, shape index: {}]
  %s3 = inlined_call_operand.vmem [shape: f32[128,128], index: 3, kind: input, shape index: {}]
  %s4 = inlined_call_operand.vmem [shape: f32[8,8,128], index: 4, kind: output, shape index: {}]
  %s5 = sld [smem:[#allocation0]]
  $region30: #{rnn_forward.1} parent=0
    _
  %s7 = ssub.s32 1, %s5
  %s8 = scalar_select 0, %s7, %s5
  // Predicated region
  $region2: #{rnn_forward.1} parent=0 // pred_check
    _
  $region3: #{rnn_forward.1} parent=0 // pred_check_branch
    %10 = sbr.rel (0) target = $region5
  $region4: #{rnn_forward.1} parent=0 // pred_region
    _
  $region5: #{rnn_forward.1} parent=0 // pred_fallthru
    _
  // Predicated region
  $region6: #{rnn_forward.1} parent=0 // pred_check
    _
  $region7: #{rnn_forward.1} parent=0 // pred_check_branch
    %12 = sbr.rel (0) target = $region9
  $region8: #{rnn_forward.1} parent=0 // pred_region
    _
  $region9: #{rnn_forward.1} parent=0 // pred_fallthru
    _
  // Predicated region
  $region10: #{rnn_forward.1} parent=0 // pred_check
    _
  $region11: #{rnn_forward.1} parent=0 // pred_check_branch
    %14 = sbr.rel (0) target = $region13
  $region12: #{rnn_forward.1} parent=0 // pred_region
    _
  $region13: #{rnn_forward.1} parent=0 // pred_fallthru
    _
  // Predicated region
  $region14: #{rnn_forward.1} parent=0 // pred_check
    _
  $region15: #{rnn_forward.1} parent=0 // pred_check_branch
    %16 = sbr.rel (0) target = $region17
  $region16: #{rnn_forward.1} parent=0 // pred_region
    _
  $region17: #{rnn_forward.1} parent=0 // pred_fallthru
    _
  %p17 = scmp.eq.s32.totalorder 0, 0
  // Predicated region
  $region18: #{rnn_forward.1} parent=0 // pred_check
    %p18 = pneg %p17
  $region19: #{rnn_forward.1} parent=0 // pred_check_branch
    %20 = sbr.rel (%p18) target = $region21
  $region20: #{rnn_forward.1} parent=0 // pred_region
    %21 = vst [vmem:[#allocation2] sm:$0xff] 0.0
  $region21: #{rnn_forward.1} parent=0 // pred_fallthru
    _
  %v22 = vld [vmem:[%s2] sm:$0x1]
  %v24 = vperm.slane %v22, 0
  %v26 = vld [vmem:[#allocation2] sm:$0xff]
  %v27 = vld [vmem:[%s0] sm:$0xff]
  %v28 = vld [vmem:[%s1] sm:$0xff]
  %v29 = vld [vmem:[%s1 + $0x8] sm:$0xff]
  %v30 = vld [vmem:[%s1 + $0x10] sm:$0xff]
  %v31 = vld [vmem:[%s1 + $0x18] sm:$0xff]
  %v32 = vld [vmem:[%s1 + $0x20] sm:$0xff]
  %v33 = vld [vmem:[%s1 + $0x28] sm:$0xff]
  %v34 = vld [vmem:[%s1 + $0x30] sm:$0xff]
  %v35 = vld [vmem:[%s1 + $0x38] sm:$0xff]
  %v36 = vld [vmem:[%s1 + $0x40] sm:$0xff]
  %v37 = vld [vmem:[%s1 + $0x48] sm:$0xff]
  %v38 = vld [vmem:[%s1 + $0x50] sm:$0xff]
  %v39 = vld [vmem:[%s1 + $0x58] sm:$0xff]
  %v40 = vld [vmem:[%s1 + $0x60] sm:$0xff]
  %v41 = vld [vmem:[%s1 + $0x68] sm:$0xff]
  %v42 = vld [vmem:[%s1 + $0x70] sm:$0xff]
  %v43 = vld [vmem:[%s1 + $0x78] sm:$0xff]
  %v44 = vld [vmem:[%s3] sm:$0xff]
  %v45 = vld [vmem:[%s3 + $0x8] sm:$0xff]
  %v46 = vld [vmem:[%s3 + $0x10] sm:$0xff]
  %v47 = vld [vmem:[%s3 + $0x18] sm:$0xff]
  %v48 = vld [vmem:[%s3 + $0x20] sm:$0xff]
  %v49 = vld [vmem:[%s3 + $0x28] sm:$0xff]
  %v50 = vld [vmem:[%s3 + $0x30] sm:$0xff]
  %v51 = vld [vmem:[%s3 + $0x38] sm:$0xff]
  %v52 = vld [vmem:[%s3 + $0x40] sm:$0xff]
  %v53 = vld [vmem:[%s3 + $0x48] sm:$0xff]
  %v54 = vld [vmem:[%s3 + $0x50] sm:$0xff]
  %v55 = vld [vmem:[%s3 + $0x58] sm:$0xff]
  %v56 = vld [vmem:[%s3 + $0x60] sm:$0xff]
  %v57 = vld [vmem:[%s3 + $0x68] sm:$0xff]
  %v58 = vld [vmem:[%s3 + $0x70] sm:$0xff]
  %v59 = vld [vmem:[%s3 + $0x78] sm:$0xff]
  %60 = vmatpush.msra.mxu0 %v59
  %61 = vmatpush.msra.mxu0 %v58
  %62 = vmatpush.msra.mxu0 %v57
  %63 = vmatpush.msra.mxu0 %v56
  %64 = vmatpush.msra.mxu0 %v55
  %65 = vmatpush.msra.mxu0 %v54
  %66 = vmatpush.msra.mxu0 %v53
  %67 = vmatpush.msra.mxu0 %v52
  %68 = vmatpush.msra.mxu0 %v51
  %69 = vmatpush.msra.mxu0 %v50
  %70 = vmatpush.msra.mxu0 %v49
  %71 = vmatpush.msra.mxu0 %v48
  %72 = vmatpush.msra.mxu0 %v47
  %73 = vmatpush.msra.mxu0 %v46
  %74 = vmatpush.msra.mxu0 %v45
  %75 = vmatpush.msra.mxu0 %v44
  %76 = vmatmul.f32.gmra.mxu0 %v26
  %v77 = vpop.f32.mrf.mxu0
  %v78 = vadd.f32 0.0, %v77
  %79 = vdwg.mxu0
  %80 = vmatpush.msra.mxu0 %v43
  %81 = vmatpush.msra.mxu0 %v42
  %82 = vmatpush.msra.mxu0 %v41
  %83 = vmatpush.msra.mxu0 %v40
  %84 = vmatpush.msra.mxu0 %v39
  %85 = vmatpush.msra.mxu0 %v38
  %86 = vmatpush.msra.mxu0 %v37
  %87 = vmatpush.msra.mxu0 %v36
  %88 = vmatpush.msra.mxu0 %v35
  %89 = vmatpush.msra.mxu0 %v34
  %90 = vmatpush.msra.mxu0 %v33
  %91 = vmatpush.msra.mxu0 %v32
  %92 = vmatpush.msra.mxu0 %v31
  %93 = vmatpush.msra.mxu0 %v30
  %94 = vmatpush.msra.mxu0 %v29
  %95 = vmatpush.msra.mxu0 %v28
  %96 = vmatmul.f32.gmra.mxu0 %v27
  %v97 = vpop.f32.mrf.mxu0
  %v98 = vadd.f32 %v78, %v97
  %99 = vdwg.mxu0
  %v100 = vadd.f32 %v98, %v24
  %v101 = vmax.f32 %v100, 0.0
  %102 = vst [vmem:[%s4] sm:$0xff] %v101
  %s103 = scalar_lea.vmem %s0, 8
  %v104 = vld [vmem:[%s103] sm:$0xff]
  %v105 = vld [vmem:[%s1] sm:$0xff]
  %v106 = vld [vmem:[%s1 + $0x8] sm:$0xff]
  %v107 = vld [vmem:[%s1 + $0x10] sm:$0xff]
  %v108 = vld [vmem:[%s1 + $0x18] sm:$0xff]
  %v109 = vld [vmem:[%s1 + $0x20] sm:$0xff]
  %v110 = vld [vmem:[%s1 + $0x28] sm:$0xff]
  %v111 = vld [vmem:[%s1 + $0x30] sm:$0xff]
  %v112 = vld [vmem:[%s1 + $0x38] sm:$0xff]
  %v113 = vld [vmem:[%s1 + $0x40] sm:$0xff]
  %v114 = vld [vmem:[%s1 + $0x48] sm:$0xff]
  %v115 = vld [vmem:[%s1 + $0x50] sm:$0xff]
  %v116 = vld [vmem:[%s1 + $0x58] sm:$0xff]
  %v117 = vld [vmem:[%s1 + $0x60] sm:$0xff]
  %v118 = vld [vmem:[%s1 + $0x68] sm:$0xff]
  %v119 = vld [vmem:[%s1 + $0x70] sm:$0xff]
  %v120 = vld [vmem:[%s1 + $0x78] sm:$0xff]
  %v121 = vld [vmem:[%s3] sm:$0xff]
  %v122 = vld [vmem:[%s3 + $0x8] sm:$0xff]
  %v123 = vld [vmem:[%s3 + $0x10] sm:$0xff]
  %v124 = vld [vmem:[%s3 + $0x18] sm:$0xff]
  %v125 = vld [vmem:[%s3 + $0x20] sm:$0xff]
  %v126 = vld [vmem:[%s3 + $0x28] sm:$0xff]
  %v127 = vld [vmem:[%s3 + $0x30] sm:$0xff]
  %v128 = vld [vmem:[%s3 + $0x38] sm:$0xff]
  %v129 = vld [vmem:[%s3 + $0x40] sm:$0xff]
  %v130 = vld [vmem:[%s3 + $0x48] sm:$0xff]
  %v131 = vld [vmem:[%s3 + $0x50] sm:$0xff]
  %v132 = vld [vmem:[%s3 + $0x58] sm:$0xff]
  %v133 = vld [vmem:[%s3 + $0x60] sm:$0xff]
  %v134 = vld [vmem:[%s3 + $0x68] sm:$0xff]
  %v135 = vld [vmem:[%s3 + $0x70] sm:$0xff]
  %v136 = vld [vmem:[%s3 + $0x78] sm:$0xff]
  %137 = vmatpush.msra.mxu0 %v136
  %138 = vmatpush.msra.mxu0 %v135
  %139 = vmatpush.msra.mxu0 %v134
  %140 = vmatpush.msra.mxu0 %v133
  %141 = vmatpush.msra.mxu0 %v132
  %142 = vmatpush.msra.mxu0 %v131
  %143 = vmatpush.msra.mxu0 %v130
  %144 = vmatpush.msra.mxu0 %v129
  %145 = vmatpush.msra.mxu0 %v128
  %146 = vmatpush.msra.mxu0 %v127
  %147 = vmatpush.msra.mxu0 %v126
  %148 = vmatpush.msra.mxu0 %v125
  %149 = vmatpush.msra.mxu0 %v124
  %150 = vmatpush.msra.mxu0 %v123
  %151 = vmatpush.msra.mxu0 %v122
  %152 = vmatpush.msra.mxu0 %v121
  %153 = vmatmul.f32.gmra.mxu0 %v101
  %v154 = vpop.f32.mrf.mxu0
  %v155 = vadd.f32 0.0, %v154
  %156 = vdwg.mxu0
  %157 = vmatpush.msra.mxu0 %v120
  %158 = vmatpush.msra.mxu0 %v119
  %159 = vmatpush.msra.mxu0 %v118
  %160 = vmatpush.msra.mxu0 %v117
  %161 = vmatpush.msra.mxu0 %v116
  %162 = vmatpush.msra.mxu0 %v115
  %163 = vmatpush.msra.mxu0 %v114
  %164 = vmatpush.msra.mxu0 %v113
  %165 = vmatpush.msra.mxu0 %v112
  %166 = vmatpush.msra.mxu0 %v111
  %167 = vmatpush.msra.mxu0 %v110
  %168 = vmatpush.msra.mxu0 %v109
  %169 = vmatpush.msra.mxu0 %v108
  %170 = vmatpush.msra.mxu0 %v107
  %171 = vmatpush.msra.mxu0 %v106
  %172 = vmatpush.msra.mxu0 %v105
  %173 = vmatmul.f32.gmra.mxu0 %v104
  %v174 = vpop.f32.mrf.mxu0
  %v175 = vadd.f32 %v155, %v174
  %176 = vdwg.mxu0
  %v177 = vadd.f32 %v175, %v24
  %v178 = vmax.f32 %v177, 0.0
  %s179 = scalar_lea.vmem %s4, 8
  %180 = vst [vmem:[%s179] sm:$0xff] %v178
  %s181 = scalar_lea.vmem %s0, 16
  %v182 = vld [vmem:[%s181] sm:$0xff]
  %v183 = vld [vmem:[%s1] sm:$0xff]
  %v184 = vld [vmem:[%s1 + $0x8] sm:$0xff]
  %v185 = vld [vmem:[%s1 + $0x10] sm:$0xff]
  %v186 = vld [vmem:[%s1 + $0x18] sm:$0xff]
  %v187 = vld [vmem:[%s1 + $0x20] sm:$0xff]
  %v188 = vld [vmem:[%s1 + $0x28] sm:$0xff]
  %v189 = vld [vmem:[%s1 + $0x30] sm:$0xff]
  %v190 = vld [vmem:[%s1 + $0x38] sm:$0xff]
  %v191 = vld [vmem:[%s1 + $0x40] sm:$0xff]
  %v192 = vld [vmem:[%s1 + $0x48] sm:$0xff]
  %v193 = vld [vmem:[%s1 + $0x50] sm:$0xff]
  %v194 = vld [vmem:[%s1 + $0x58] sm:$0xff]
  %v195 = vld [vmem:[%s1 + $0x60] sm:$0xff]
  %v196 = vld [vmem:[%s1 + $0x68] sm:$0xff]
  %v197 = vld [vmem:[%s1 + $0x70] sm:$0xff]
  %v198 = vld [vmem:[%s1 + $0x78] sm:$0xff]
  %v199 = vld [vmem:[%s3] sm:$0xff]
  %v200 = vld [vmem:[%s3 + $0x8] sm:$0xff]
  %v201 = vld [vmem:[%s3 + $0x10] sm:$0xff]
  %v202 = vld [vmem:[%s3 + $0x18] sm:$0xff]
  %v203 = vld [vmem:[%s3 + $0x20] sm:$0xff]
  %v204 = vld [vmem:[%s3 + $0x28] sm:$0xff]
  %v205 = vld [vmem:[%s3 + $0x30] sm:$0xff]
  %v206 = vld [vmem:[%s3 + $0x38] sm:$0xff]
  %v207 = vld [vmem:[%s3 + $0x40] sm:$0xff]
  %v208 = vld [vmem:[%s3 + $0x48] sm:$0xff]
  %v209 = vld [vmem:[%s3 + $0x50] sm:$0xff]
  %v210 = vld [vmem:[%s3 + $0x58] sm:$0xff]
  %v211 = vld [vmem:[%s3 + $0x60] sm:$0xff]
  %v212 = vld [vmem:[%s3 + $0x68] sm:$0xff]
  %v213 = vld [vmem:[%s3 + $0x70] sm:$0xff]
  %v214 = vld [vmem:[%s3 + $0x78] sm:$0xff]
  %215 = vmatpush.msra.mxu0 %v214
  %216 = vmatpush.msra.mxu0 %v213
  %217 = vmatpush.msra.mxu0 %v212
  %218 = vmatpush.msra.mxu0 %v211
  %219 = vmatpush.msra.mxu0 %v210
  %220 = vmatpush.msra.mxu0 %v209
  %221 = vmatpush.msra.mxu0 %v208
  %222 = vmatpush.msra.mxu0 %v207
  %223 = vmatpush.msra.mxu0 %v206
  %224 = vmatpush.msra.mxu0 %v205
  %225 = vmatpush.msra.mxu0 %v204
  %226 = vmatpush.msra.mxu0 %v203
  %227 = vmatpush.msra.mxu0 %v202
  %228 = vmatpush.msra.mxu0 %v201
  %229 = vmatpush.msra.mxu0 %v200
  %230 = vmatpush.msra.mxu0 %v199
  %231 = vmatmul.f32.gmra.mxu0 %v178
  %v232 = vpop.f32.mrf.mxu0
  %v233 = vadd.f32 0.0, %v232
  %234 = vdwg.mxu0
  %235 = vmatpush.msra.mxu0 %v198
  %236 = vmatpush.msra.mxu0 %v197
  %237 = vmatpush.msra.mxu0 %v196
  %238 = vmatpush.msra.mxu0 %v195
  %239 = vmatpush.msra.mxu0 %v194
  %240 = vmatpush.msra.mxu0 %v193
  %241 = vmatpush.msra.mxu0 %v192
  %242 = vmatpush.msra.mxu0 %v191
  %243 = vmatpush.msra.mxu0 %v190
  %244 = vmatpush.msra.mxu0 %v189
  %245 = vmatpush.msra.mxu0 %v188
  %246 = vmatpush.msra.mxu0 %v187
  %247 = vmatpush.msra.mxu0 %v186
  %248 = vmatpush.msra.mxu0 %v185
  %249 = vmatpush.msra.mxu0 %v184
  %250 = vmatpush.msra.mxu0 %v183
  %251 = vmatmul.f32.gmra.mxu0 %v182
  %v252 = vpop.f32.mrf.mxu0
  %v253 = vadd.f32 %v233, %v252
  %254 = vdwg.mxu0
  %v255 = vadd.f32 %v253, %v24
  %v256 = vmax.f32 %v255, 0.0
  %s257 = scalar_lea.vmem %s4, 16
  %258 = vst [vmem:[%s257] sm:$0xff] %v256
  %s259 = scalar_lea.vmem %s0, 24
  %v260 = vld [vmem:[%s259] sm:$0xff]
  %v261 = vld [vmem:[%s1] sm:$0xff]
  %v262 = vld [vmem:[%s1 + $0x8] sm:$0xff]
  %v263 = vld [vmem:[%s1 + $0x10] sm:$0xff]
  %v264 = vld [vmem:[%s1 + $0x18] sm:$0xff]
  %v265 = vld [vmem:[%s1 + $0x20] sm:$0xff]
  %v266 = vld [vmem:[%s1 + $0x28] sm:$0xff]
  %v267 = vld [vmem:[%s1 + $0x30] sm:$0xff]
  %v268 = vld [vmem:[%s1 + $0x38] sm:$0xff]
  %v269 = vld [vmem:[%s1 + $0x40] sm:$0xff]
  %v270 = vld [vmem:[%s1 + $0x48] sm:$0xff]
  %v271 = vld [vmem:[%s1 + $0x50] sm:$0xff]
  %v272 = vld [vmem:[%s1 + $0x58] sm:$0xff]
  %v273 = vld [vmem:[%s1 + $0x60] sm:$0xff]
  %v274 = vld [vmem:[%s1 + $0x68] sm:$0xff]
  %v275 = vld [vmem:[%s1 + $0x70] sm:$0xff]
  %v276 = vld [vmem:[%s1 + $0x78] sm:$0xff]
  %v277 = vld [vmem:[%s3] sm:$0xff]
  %v278 = vld [vmem:[%s3 + $0x8] sm:$0xff]
  %v279 = vld [vmem:[%s3 + $0x10] sm:$0xff]
  %v280 = vld [vmem:[%s3 + $0x18] sm:$0xff]
  %v281 = vld [vmem:[%s3 + $0x20] sm:$0xff]
  %v282 = vld [vmem:[%s3 + $0x28] sm:$0xff]
  %v283 = vld [vmem:[%s3 + $0x30] sm:$0xff]
  %v284 = vld [vmem:[%s3 + $0x38] sm:$0xff]
  %v285 = vld [vmem:[%s3 + $0x40] sm:$0xff]
  %v286 = vld [vmem:[%s3 + $0x48] sm:$0xff]
  %v287 = vld [vmem:[%s3 + $0x50] sm:$0xff]
  %v288 = vld [vmem:[%s3 + $0x58] sm:$0xff]
  %v289 = vld [vmem:[%s3 + $0x60] sm:$0xff]
  %v290 = vld [vmem:[%s3 + $0x68] sm:$0xff]
  %v291 = vld [vmem:[%s3 + $0x70] sm:$0xff]
  %v292 = vld [vmem:[%s3 + $0x78] sm:$0xff]
  %293 = vmatpush.msra.mxu0 %v292
  %294 = vmatpush.msra.mxu0 %v291
  %295 = vmatpush.msra.mxu0 %v290
  %296 = vmatpush.msra.mxu0 %v289
  %297 = vmatpush.msra.mxu0 %v288
  %298 = vmatpush.msra.mxu0 %v287
  %299 = vmatpush.msra.mxu0 %v286
  %300 = vmatpush.msra.mxu0 %v285
  %301 = vmatpush.msra.mxu0 %v284
  %302 = vmatpush.msra.mxu0 %v283
  %303 = vmatpush.msra.mxu0 %v282
  %304 = vmatpush.msra.mxu0 %v281
  %305 = vmatpush.msra.mxu0 %v280
  %306 = vmatpush.msra.mxu0 %v279
  %307 = vmatpush.msra.mxu0 %v278
  %308 = vmatpush.msra.mxu0 %v277
  %309 = vmatmul.f32.gmra.mxu0 %v256
  %v310 = vpop.f32.mrf.mxu0
  %v311 = vadd.f32 0.0, %v310
  %312 = vdwg.mxu0
  %313 = vmatpush.msra.mxu0 %v276
  %314 = vmatpush.msra.mxu0 %v275
  %315 = vmatpush.msra.mxu0 %v274
  %316 = vmatpush.msra.mxu0 %v273
  %317 = vmatpush.msra.mxu0 %v272
  %318 = vmatpush.msra.mxu0 %v271
  %319 = vmatpush.msra.mxu0 %v270
  %320 = vmatpush.msra.mxu0 %v269
  %321 = vmatpush.msra.mxu0 %v268
  %322 = vmatpush.msra.mxu0 %v267
  %323 = vmatpush.msra.mxu0 %v266
  %324 = vmatpush.msra.mxu0 %v265
  %325 = vmatpush.msra.mxu0 %v264
  %326 = vmatpush.msra.mxu0 %v263
  %327 = vmatpush.msra.mxu0 %v262
  %328 = vmatpush.msra.mxu0 %v261
  %329 = vmatmul.f32.gmra.mxu0 %v260
  %v330 = vpop.f32.mrf.mxu0
  %v331 = vadd.f32 %v311, %v330
  %332 = vdwg.mxu0
  %v333 = vadd.f32 %v331, %v24
  %v334 = vmax.f32 %v333, 0.0
  %s335 = scalar_lea.vmem %s4, 24
  %336 = vst [vmem:[%s335] sm:$0xff] %v334
  %s337 = scalar_lea.vmem %s0, 32
  %v338 = vld [vmem:[%s337] sm:$0xff]
  %v339 = vld [vmem:[%s1] sm:$0xff]
  %v340 = vld [vmem:[%s1 + $0x8] sm:$0xff]
  %v341 = vld [vmem:[%s1 + $0x10] sm:$0xff]
  %v342 = vld [vmem:[%s1 + $0x18] sm:$0xff]
  %v343 = vld [vmem:[%s1 + $0x20] sm:$0xff]
  %v344 = vld [vmem:[%s1 + $0x28] sm:$0xff]
  %v345 = vld [vmem:[%s1 + $0x30] sm:$0xff]
  %v346 = vld [vmem:[%s1 + $0x38] sm:$0xff]
  %v347 = vld [vmem:[%s1 + $0x40] sm:$0xff]
  %v348 = vld [vmem:[%s1 + $0x48] sm:$0xff]
  %v349 = vld [vmem:[%s1 + $0x50] sm:$0xff]
  %v350 = vld [vmem:[%s1 + $0x58] sm:$0xff]
  %v351 = vld [vmem:[%s1 + $0x60] sm:$0xff]
  %v352 = vld [vmem:[%s1 + $0x68] sm:$0xff]
  %v353 = vld [vmem:[%s1 + $0x70] sm:$0xff]
  %v354 = vld [vmem:[%s1 + $0x78] sm:$0xff]
  %v355 = vld [vmem:[%s3] sm:$0xff]
  %v356 = vld [vmem:[%s3 + $0x8] sm:$0xff]
  %v357 = vld [vmem:[%s3 + $0x10] sm:$0xff]
  %v358 = vld [vmem:[%s3 + $0x18] sm:$0xff]
  %v359 = vld [vmem:[%s3 + $0x20] sm:$0xff]
  %v360 = vld [vmem:[%s3 + $0x28] sm:$0xff]
  %v361 = vld [vmem:[%s3 + $0x30] sm:$0xff]
  %v362 = vld [vmem:[%s3 + $0x38] sm:$0xff]
  %v363 = vld [vmem:[%s3 + $0x40] sm:$0xff]
  %v364 = vld [vmem:[%s3 + $0x48] sm:$0xff]
  %v365 = vld [vmem:[%s3 + $0x50] sm:$0xff]
  %v366 = vld [vmem:[%s3 + $0x58] sm:$0xff]
  %v367 = vld [vmem:[%s3 + $0x60] sm:$0xff]
  %v368 = vld [vmem:[%s3 + $0x68] sm:$0xff]
  %v369 = vld [vmem:[%s3 + $0x70] sm:$0xff]
  %v370 = vld [vmem:[%s3 + $0x78] sm:$0xff]
  %371 = vmatpush.msra.mxu0 %v370
  %372 = vmatpush.msra.mxu0 %v369
  %373 = vmatpush.msra.mxu0 %v368
  %374 = vmatpush.msra.mxu0 %v367
  %375 = vmatpush.msra.mxu0 %v366
  %376 = vmatpush.msra.mxu0 %v365
  %377 = vmatpush.msra.mxu0 %v364
  %378 = vmatpush.msra.mxu0 %v363
  %379 = vmatpush.msra.mxu0 %v362
  %380 = vmatpush.msra.mxu0 %v361
  %381 = vmatpush.msra.mxu0 %v360
  %382 = vmatpush.msra.mxu0 %v359
  %383 = vmatpush.msra.mxu0 %v358
  %384 = vmatpush.msra.mxu0 %v357
  %385 = vmatpush.msra.mxu0 %v356
  %386 = vmatpush.msra.mxu0 %v355
  %387 = vmatmul.f32.gmra.mxu0 %v334
  %v388 = vpop.f32.mrf.mxu0
  %v389 = vadd.f32 0.0, %v388
  %390 = vdwg.mxu0
  %391 = vmatpush.msra.mxu0 %v354
  %392 = vmatpush.msra.mxu0 %v353
  %393 = vmatpush.msra.mxu0 %v352
  %394 = vmatpush.msra.mxu0 %v351
  %395 = vmatpush.msra.mxu0 %v350
  %396 = vmatpush.msra.mxu0 %v349
  %397 = vmatpush.msra.mxu0 %v348
  %398 = vmatpush.msra.mxu0 %v347
  %399 = vmatpush.msra.mxu0 %v346
  %400 = vmatpush.msra.mxu0 %v345
  %401 = vmatpush.msra.mxu0 %v344
  %402 = vmatpush.msra.mxu0 %v343
  %403 = vmatpush.msra.mxu0 %v342
  %404 = vmatpush.msra.mxu0 %v341
  %405 = vmatpush.msra.mxu0 %v340
  %406 = vmatpush.msra.mxu0 %v339
  %407 = vmatmul.f32.gmra.mxu0 %v338
  %v408 = vpop.f32.mrf.mxu0
  %v409 = vadd.f32 %v389, %v408
  %410 = vdwg.mxu0
  %v411 = vadd.f32 %v409, %v24
  %v412 = vmax.f32 %v411, 0.0
  %s413 = scalar_lea.vmem %s4, 32
  %414 = vst [vmem:[%s413] sm:$0xff] %v412
  %s415 = scalar_lea.vmem %s0, 40
  %v416 = vld [vmem:[%s415] sm:$0xff]
  %v417 = vld [vmem:[%s1] sm:$0xff]
  %v418 = vld [vmem:[%s1 + $0x8] sm:$0xff]
  %v419 = vld [vmem:[%s1 + $0x10] sm:$0xff]
  %v420 = vld [vmem:[%s1 + $0x18] sm:$0xff]
  %v421 = vld [vmem:[%s1 + $0x20] sm:$0xff]
  %v422 = vld [vmem:[%s1 + $0x28] sm:$0xff]
  %v423 = vld [vmem:[%s1 + $0x30] sm:$0xff]
  %v424 = vld [vmem:[%s1 + $0x38] sm:$0xff]
  %v425 = vld [vmem:[%s1 + $0x40] sm:$0xff]
  %v426 = vld [vmem:[%s1 + $0x48] sm:$0xff]
  %v427 = vld [vmem:[%s1 + $0x50] sm:$0xff]
  %v428 = vld [vmem:[%s1 + $0x58] sm:$0xff]
  %v429 = vld [vmem:[%s1 + $0x60] sm:$0xff]
  %v430 = vld [vmem:[%s1 + $0x68] sm:$0xff]
  %v431 = vld [vmem:[%s1 + $0x70] sm:$0xff]
  %v432 = vld [vmem:[%s1 + $0x78] sm:$0xff]
  %v433 = vld [vmem:[%s3] sm:$0xff]
  %v434 = vld [vmem:[%s3 + $0x8] sm:$0xff]
  %v435 = vld [vmem:[%s3 + $0x10] sm:$0xff]
  %v436 = vld [vmem:[%s3 + $0x18] sm:$0xff]
  %v437 = vld [vmem:[%s3 + $0x20] sm:$0xff]
  %v438 = vld [vmem:[%s3 + $0x28] sm:$0xff]
  %v439 = vld [vmem:[%s3 + $0x30] sm:$0xff]
  %v440 = vld [vmem:[%s3 + $0x38] sm:$0xff]
  %v441 = vld [vmem:[%s3 + $0x40] sm:$0xff]
  %v442 = vld [vmem:[%s3 + $0x48] sm:$0xff]
  %v443 = vld [vmem:[%s3 + $0x50] sm:$0xff]
  %v444 = vld [vmem:[%s3 + $0x58] sm:$0xff]
  %v445 = vld [vmem:[%s3 + $0x60] sm:$0xff]
  %v446 = vld [vmem:[%s3 + $0x68] sm:$0xff]
  %v447 = vld [vmem:[%s3 + $0x70] sm:$0xff]
  %v448 = vld [vmem:[%s3 + $0x78] sm:$0xff]
  %449 = vmatpush.msra.mxu0 %v448
  %450 = vmatpush.msra.mxu0 %v447
  %451 = vmatpush.msra.mxu0 %v446
  %452 = vmatpush.msra.mxu0 %v445
  %453 = vmatpush.msra.mxu0 %v444
  %454 = vmatpush.msra.mxu0 %v443
  %455 = vmatpush.msra.mxu0 %v442
  %456 = vmatpush.msra.mxu0 %v441
  %457 = vmatpush.msra.mxu0 %v440
  %458 = vmatpush.msra.mxu0 %v439
  %459 = vmatpush.msra.mxu0 %v438
  %460 = vmatpush.msra.mxu0 %v437
  %461 = vmatpush.msra.mxu0 %v436
  %462 = vmatpush.msra.mxu0 %v435
  %463 = vmatpush.msra.mxu0 %v434
  %464 = vmatpush.msra.mxu0 %v433
  %465 = vmatmul.f32.gmra.mxu0 %v412
  %v466 = vpop.f32.mrf.mxu0
  %v467 = vadd.f32 0.0, %v466
  %468 = vdwg.mxu0
  %469 = vmatpush.msra.mxu0 %v432
  %470 = vmatpush.msra.mxu0 %v431
  %471 = vmatpush.msra.mxu0 %v430
  %472 = vmatpush.msra.mxu0 %v429
  %473 = vmatpush.msra.mxu0 %v428
  %474 = vmatpush.msra.mxu0 %v427
  %475 = vmatpush.msra.mxu0 %v426
  %476 = vmatpush.msra.mxu0 %v425
  %477 = vmatpush.msra.mxu0 %v424
  %478 = vmatpush.msra.mxu0 %v423
  %479 = vmatpush.msra.mxu0 %v422
  %480 = vmatpush.msra.mxu0 %v421
  %481 = vmatpush.msra.mxu0 %v420
  %482 = vmatpush.msra.mxu0 %v419
  %483 = vmatpush.msra.mxu0 %v418
  %484 = vmatpush.msra.mxu0 %v417
  %485 = vmatmul.f32.gmra.mxu0 %v416
  %v486 = vpop.f32.mrf.mxu0
  %v487 = vadd.f32 %v467, %v486
  %488 = vdwg.mxu0
  %v489 = vadd.f32 %v487, %v24
  %v490 = vmax.f32 %v489, 0.0
  %s491 = scalar_lea.vmem %s4, 40
  %492 = vst [vmem:[%s491] sm:$0xff] %v490
  %s493 = scalar_lea.vmem %s0, 48
  %v494 = vld [vmem:[%s493] sm:$0xff]
  %v495 = vld [vmem:[%s1] sm:$0xff]
  %v496 = vld [vmem:[%s1 + $0x8] sm:$0xff]
  %v497 = vld [vmem:[%s1 + $0x10] sm:$0xff]
  %v498 = vld [vmem:[%s1 + $0x18] sm:$0xff]
  %v499 = vld [vmem:[%s1 + $0x20] sm:$0xff]
  %v500 = vld [vmem:[%s1 + $0x28] sm:$0xff]
  %v501 = vld [vmem:[%s1 + $0x30] sm:$0xff]
  %v502 = vld [vmem:[%s1 + $0x38] sm:$0xff]
  %v503 = vld [vmem:[%s1 + $0x40] sm:$0xff]
  %v504 = vld [vmem:[%s1 + $0x48] sm:$0xff]
  %v505 = vld [vmem:[%s1 + $0x50] sm:$0xff]
  %v506 = vld [vmem:[%s1 + $0x58] sm:$0xff]
  %v507 = vld [vmem:[%s1 + $0x60] sm:$0xff]
  %v508 = vld [vmem:[%s1 + $0x68] sm:$0xff]
  %v509 = vld [vmem:[%s1 + $0x70] sm:$0xff]
  %v510 = vld [vmem:[%s1 + $0x78] sm:$0xff]
  %v511 = vld [vmem:[%s3] sm:$0xff]
  %v512 = vld [vmem:[%s3 + $0x8] sm:$0xff]
  %v513 = vld [vmem:[%s3 + $0x10] sm:$0xff]
  %v514 = vld [vmem:[%s3 + $0x18] sm:$0xff]
  %v515 = vld [vmem:[%s3 + $0x20] sm:$0xff]
  %v516 = vld [vmem:[%s3 + $0x28] sm:$0xff]
  %v517 = vld [vmem:[%s3 + $0x30] sm:$0xff]
  %v518 = vld [vmem:[%s3 + $0x38] sm:$0xff]
  %v519 = vld [vmem:[%s3 + $0x40] sm:$0xff]
  %v520 = vld [vmem:[%s3 + $0x48] sm:$0xff]
  %v521 = vld [vmem:[%s3 + $0x50] sm:$0xff]
  %v522 = vld [vmem:[%s3 + $0x58] sm:$0xff]
  %v523 = vld [vmem:[%s3 + $0x60] sm:$0xff]
  %v524 = vld [vmem:[%s3 + $0x68] sm:$0xff]
  %v525 = vld [vmem:[%s3 + $0x70] sm:$0xff]
  %v526 = vld [vmem:[%s3 + $0x78] sm:$0xff]
  %527 = vmatpush.msra.mxu0 %v526
  %528 = vmatpush.msra.mxu0 %v525
  %529 = vmatpush.msra.mxu0 %v524
  %530 = vmatpush.msra.mxu0 %v523
  %531 = vmatpush.msra.mxu0 %v522
  %532 = vmatpush.msra.mxu0 %v521
  %533 = vmatpush.msra.mxu0 %v520
  %534 = vmatpush.msra.mxu0 %v519
  %535 = vmatpush.msra.mxu0 %v518
  %536 = vmatpush.msra.mxu0 %v517
  %537 = vmatpush.msra.mxu0 %v516
  %538 = vmatpush.msra.mxu0 %v515
  %539 = vmatpush.msra.mxu0 %v514
  %540 = vmatpush.msra.mxu0 %v513
  %541 = vmatpush.msra.mxu0 %v512
  %542 = vmatpush.msra.mxu0 %v511
  %543 = vmatmul.f32.gmra.mxu0 %v490
  %v544 = vpop.f32.mrf.mxu0
  %v545 = vadd.f32 0.0, %v544
  %546 = vdwg.mxu0
  %547 = vmatpush.msra.mxu0 %v510
  %548 = vmatpush.msra.mxu0 %v509
  %549 = vmatpush.msra.mxu0 %v508
  %550 = vmatpush.msra.mxu0 %v507
  %551 = vmatpush.msra.mxu0 %v506
  %552 = vmatpush.msra.mxu0 %v505
  %553 = vmatpush.msra.mxu0 %v504
  %554 = vmatpush.msra.mxu0 %v503
  %555 = vmatpush.msra.mxu0 %v502
  %556 = vmatpush.msra.mxu0 %v501
  %557 = vmatpush.msra.mxu0 %v500
  %558 = vmatpush.msra.mxu0 %v499
  %559 = vmatpush.msra.mxu0 %v498
  %560 = vmatpush.msra.mxu0 %v497
  %561 = vmatpush.msra.mxu0 %v496
  %562 = vmatpush.msra.mxu0 %v495
  %563 = vmatmul.f32.gmra.mxu0 %v494
  %v564 = vpop.f32.mrf.mxu0
  %v565 = vadd.f32 %v545, %v564
  %566 = vdwg.mxu0
  %v567 = vadd.f32 %v565, %v24
  %v568 = vmax.f32 %v567, 0.0
  %s569 = scalar_lea.vmem %s4, 48
  %570 = vst [vmem:[%s569] sm:$0xff] %v568
  %s571 = scalar_lea.vmem %s0, 56
  %v572 = vld [vmem:[%s571] sm:$0xff]
  %v573 = vld [vmem:[%s1] sm:$0xff]
  %v574 = vld [vmem:[%s1 + $0x8] sm:$0xff]
  %v575 = vld [vmem:[%s1 + $0x10] sm:$0xff]
  %v576 = vld [vmem:[%s1 + $0x18] sm:$0xff]
  %v577 = vld [vmem:[%s1 + $0x20] sm:$0xff]
  %v578 = vld [vmem:[%s1 + $0x28] sm:$0xff]
  %v579 = vld [vmem:[%s1 + $0x30] sm:$0xff]
  %v580 = vld [vmem:[%s1 + $0x38] sm:$0xff]
  %v581 = vld [vmem:[%s1 + $0x40] sm:$0xff]
  %v582 = vld [vmem:[%s1 + $0x48] sm:$0xff]
  %v583 = vld [vmem:[%s1 + $0x50] sm:$0xff]
  %v584 = vld [vmem:[%s1 + $0x58] sm:$0xff]
  %v585 = vld [vmem:[%s1 + $0x60] sm:$0xff]
  %v586 = vld [vmem:[%s1 + $0x68] sm:$0xff]
  %v587 = vld [vmem:[%s1 + $0x70] sm:$0xff]
  %v588 = vld [vmem:[%s1 + $0x78] sm:$0xff]
  %v589 = vld [vmem:[%s3] sm:$0xff]
  %v590 = vld [vmem:[%s3 + $0x8] sm:$0xff]
  %v591 = vld [vmem:[%s3 + $0x10] sm:$0xff]
  %v592 = vld [vmem:[%s3 + $0x18] sm:$0xff]
  %v593 = vld [vmem:[%s3 + $0x20] sm:$0xff]
  %v594 = vld [vmem:[%s3 + $0x28] sm:$0xff]
  %v595 = vld [vmem:[%s3 + $0x30] sm:$0xff]
  %v596 = vld [vmem:[%s3 + $0x38] sm:$0xff]
  %v597 = vld [vmem:[%s3 + $0x40] sm:$0xff]
  %v598 = vld [vmem:[%s3 + $0x48] sm:$0xff]
  %v599 = vld [vmem:[%s3 + $0x50] sm:$0xff]
  %v600 = vld [vmem:[%s3 + $0x58] sm:$0xff]
  %v601 = vld [vmem:[%s3 + $0x60] sm:$0xff]
  %v602 = vld [vmem:[%s3 + $0x68] sm:$0xff]
  %v603 = vld [vmem:[%s3 + $0x70] sm:$0xff]
  %v604 = vld [vmem:[%s3 + $0x78] sm:$0xff]
  %605 = vmatpush.msra.mxu0 %v604
  %606 = vmatpush.msra.mxu0 %v603
  %607 = vmatpush.msra.mxu0 %v602
  %608 = vmatpush.msra.mxu0 %v601
  %609 = vmatpush.msra.mxu0 %v600
  %610 = vmatpush.msra.mxu0 %v599
  %611 = vmatpush.msra.mxu0 %v598
  %612 = vmatpush.msra.mxu0 %v597
  %613 = vmatpush.msra.mxu0 %v596
  %614 = vmatpush.msra.mxu0 %v595
  %615 = vmatpush.msra.mxu0 %v594
  %616 = vmatpush.msra.mxu0 %v593
  %617 = vmatpush.msra.mxu0 %v592
  %618 = vmatpush.msra.mxu0 %v591
  %619 = vmatpush.msra.mxu0 %v590
  %620 = vmatpush.msra.mxu0 %v589
  %621 = vmatmul.f32.gmra.mxu0 %v568
  %v622 = vpop.f32.mrf.mxu0
  %v623 = vadd.f32 0.0, %v622
  %624 = vdwg.mxu0
  %625 = vmatpush.msra.mxu0 %v588
  %626 = vmatpush.msra.mxu0 %v587
  %627 = vmatpush.msra.mxu0 %v586
  %628 = vmatpush.msra.mxu0 %v585
  %629 = vmatpush.msra.mxu0 %v584
  %630 = vmatpush.msra.mxu0 %v583
  %631 = vmatpush.msra.mxu0 %v582
  %632 = vmatpush.msra.mxu0 %v581
  %633 = vmatpush.msra.mxu0 %v580
  %634 = vmatpush.msra.mxu0 %v579
  %635 = vmatpush.msra.mxu0 %v578
  %636 = vmatpush.msra.mxu0 %v577
  %637 = vmatpush.msra.mxu0 %v576
  %638 = vmatpush.msra.mxu0 %v575
  %639 = vmatpush.msra.mxu0 %v574
  %640 = vmatpush.msra.mxu0 %v573
  %641 = vmatmul.f32.gmra.mxu0 %v572
  %v642 = vpop.f32.mrf.mxu0
  %v643 = vadd.f32 %v623, %v642
  %644 = vdwg.mxu0
  %v645 = vadd.f32 %v643, %v24
  %v646 = vmax.f32 %v645, 0.0
  %s647 = scalar_lea.vmem %s4, 56
  %648 = vst [vmem:[%s647] sm:$0xff] %v646
  %649 = vst [vmem:[#allocation2] sm:$0xff] %v646
  // Predicated region
  $region22: #{rnn_forward.1} parent=0 // pred_check
    _
  $region23: #{rnn_forward.1} parent=0 // pred_check_branch
    %651 = sbr.rel (0) target = $region25
  $region24: #{rnn_forward.1} parent=0 // pred_region
    _
  $region25: #{rnn_forward.1} parent=0 // pred_fallthru
    _
  // Predicated region
  $region26: #{rnn_forward.1} parent=0 // pred_check
    _
  $region27: #{rnn_forward.1} parent=0 // pred_check_branch
    %653 = sbr.rel (0) target = $region29
  $region28: #{rnn_forward.1} parent=0 // pred_region
    _
  $region29: #{rnn_forward.1} parent=0 // pred_fallthru
    _

</llo_original>
